<compile_context>
chip_gen: v6e
topology: v6e:2x2x1
jax: 0.10.0
libtpu: 0.0.40
codegen_flags: <defaults>
</compile_context>

<pallas_src>
import jax
import jax.numpy as jnp
from jax.experimental import pallas as pl
from jax.experimental.pallas import tpu as pltpu

LN_EPS = 1e-5  # nn.LayerNorm default


def patch_embed_kernel(x_ref, wf_ref, vec_ref, pos_ref, o_ref):
    """x_ref: (B*N, C) tokens; wf_ref: (C, D) fused weight;
    vec_ref: (3, D) = [b_fused; gamma; beta]; pos_ref: (N, D); o_ref: (B, N, D)."""
    B, N, D = o_ref.shape

    # Fused conv(k=1)-as-linear + mlp: single per-token matmul on the MXU.
    h = jnp.dot(x_ref[...], wf_ref[...],
                preferred_element_type=jnp.float32) + vec_ref[0:1, :]

    # LayerNorm over the embedding dim (biased variance, eps=1e-5).
    mean = jnp.mean(h, axis=-1, keepdims=True)
    c = h - mean
    var = jnp.mean(c * c, axis=-1, keepdims=True)
    hn = c * jax.lax.rsqrt(var + LN_EPS)
    hn = hn * vec_ref[1:2, :] + vec_ref[2:3, :]

    # + pos_embed (broadcast over batch); Dropout(p=0.0) is identity.
    # (B*N, D) -> (B, N, D) only splits the leading (sublane-major) dim, so it
    # is a layout-free reshape.
    o_ref[...] = (hn.reshape(B, N, D) + pos_ref[...][None, :, :]).astype(o_ref.dtype)


def patch_embed_forward(x, params, *, cp, sp):
    """x: (B, nc*cp, nh*sp, nw*sp) float32 (NCHW), returns (B, N, D)."""
    B, Ctot, H, W = x.shape
    nc, nh, nw = Ctot // cp, H // sp, W // sp
    C = cp * sp * sp
    N = nc * nh * nw
    D = params["wc"].shape[1]

    # glue: 'b (nc cp) (nh hp) (nw wp) -> (b nc nh nw) (cp hp wp)'
    # (matches conv3d input layout + flatten(2).transpose(1,2) token order)
    x6 = x.reshape(B, nc, cp, nh, sp, nw, sp).transpose(0, 1, 3, 5, 2, 4, 6)
    xm = x6.reshape(B * N, C)

    # Exact algebraic fusion of conv(k=1) and mlp (no nonlinearity between).
    w_fused = params["wc"] @ params["wm"]                       # (C, D)
    b_fused = params["bc"] @ params["wm"] + params["bm"]        # (1, D)
    vecs = jnp.concatenate([b_fused, params["gamma"], params["beta"]], axis=0)  # (3, D)

    vmem = pl.BlockSpec(memory_space=pltpu.MemorySpace.VMEM)
    return pl.pallas_call(
        patch_embed_kernel,
        out_shape=jax.ShapeDtypeStruct((B, N, D), x.dtype),
        in_specs=[vmem, vmem, vmem, vmem],
        out_specs=vmem,
    )(xm, w_fused, vecs, params["pos"])


def patch_embed_reference(x, params, *, cp, sp):
    """Pure-JAX reference mirroring the (unfused) PyTorch forward."""
    B, Ctot, H, W = x.shape
    nc, nh, nw = Ctot // cp, H // sp, W // sp
    C = cp * sp * sp
    N = nc * nh * nw
    x6 = x.reshape(B, nc, cp, nh, sp, nw, sp).transpose(0, 1, 3, 5, 2, 4, 6)
    xm = x6.reshape(B, N, C)
    h = xm @ params["wc"] + params["bc"]
    h = h @ params["wm"] + params["bm"]
    mean = h.mean(-1, keepdims=True)
    var = ((h - mean) ** 2).mean(-1, keepdims=True)
    hn = (h - mean) / jnp.sqrt(var + LN_EPS) * params["gamma"] + params["beta"]
    return hn + params["pos"][None]


if __name__ == "__main__":
    # Module config: spatial_patch_size=2, channel_patch_size=2,
    # out_channel = embed_dim = 32, k=1, num_patches = nc*nh*nw = 128.
    cp, sp = 2, 2
    nc, nh, nw = 2, 8, 8
    B = 2
    C = cp * sp * sp          # 8   (Conv3d in_channels)
    N = nc * nh * nw          # 128 (num_patches)
    D = 32                    # out_channel == embed_dim

    key = jax.random.PRNGKey(0)
    ks = jax.random.split(key, 6)
    x = jax.random.normal(ks[0], (B, nc * cp, nh * sp, nw * sp), jnp.float32)

    # Deterministic synthetic parameters (shapes from __init__):
    #   conv:  Conv3d(C, D, k=1)  -> weight stored transposed as (C, D)
    #   mlp:   Linear(D, D)       -> weight stored transposed as (D, D)
    #   norm:  LayerNorm(D)
    #   pos_embed: (1, N, D)      -> stored squeezed as (N, D)
    params = dict(
        wc=jax.random.normal(ks[1], (C, D), jnp.float32) * 0.05,
        bc=jax.random.normal(ks[2], (1, D), jnp.float32) * 0.05,
        wm=jax.random.normal(ks[3], (D, D), jnp.float32) * 0.05,
        bm=jax.random.normal(ks[4], (1, D), jnp.float32) * 0.05,
        gamma=jnp.ones((1, D), jnp.float32),
        beta=jnp.zeros((1, D), jnp.float32),
        pos=jax.random.normal(ks[5], (N, D), jnp.float32) * 0.02,
    )

    out = jax.block_until_ready(patch_embed_forward(x, params, cp=cp, sp=sp))
    ref = patch_embed_reference(x, params, cp=cp, sp=sp)
    assert out.shape == (B, N, D)
    assert jnp.allclose(out, ref, atol=1e-4, rtol=1e-4)
    print("KERNEL_OK")
</pallas_src>

<mosaic_0001>
module attributes {stable_mosaic.version = 11 : i64} {
  func.func @patch_embed_kernel(%arg0: memref<256x8xf32, #tpu.memory_space<vmem>>, %arg1: memref<8x32xf32, #tpu.memory_space<vmem>>, %arg2: memref<3x32xf32, #tpu.memory_space<vmem>>, %arg3: memref<128x32xf32, #tpu.memory_space<vmem>>, %arg4: memref<2x128x32xf32, #tpu.memory_space<vmem>>) attributes {dimension_semantics = [], scalar_prefetch = 0 : i64, scratch_operands = 0 : i64, tpu.core_type = #tpu.core_type<tc>} {
    %c0 = arith.constant 0 : index
    %c0_0 = arith.constant 0 : index
    %0 = vector.load %arg0[%c0, %c0_0] : memref<256x8xf32, #tpu.memory_space<vmem>>, vector<256x8xf32>
    %c0_1 = arith.constant 0 : index
    %c0_2 = arith.constant 0 : index
    %1 = vector.load %arg1[%c0_1, %c0_2] : memref<8x32xf32, #tpu.memory_space<vmem>>, vector<8x32xf32>
    %cst = arith.constant dense<0.000000e+00> : vector<256x32xf32>
    %2 = tpu.matmul %0, %1, %cst {dimension_numbers = #tpu.dot_dimension_numbers<[1], [0], [0], [1], [0, 0, 1, 1], [], []>} : vector<256x8xf32>, vector<8x32xf32>, vector<256x32xf32> -> vector<256x32xf32>
    %c0_3 = arith.constant 0 : index
    %c0_4 = arith.constant 0 : index
    %3 = vector.load %arg2[%c0_3, %c0_4] : memref<3x32xf32, #tpu.memory_space<vmem>>, vector<1x32xf32>
    %4 = vector.broadcast %3 : vector<1x32xf32> to vector<256x32xf32>
    %5 = arith.addf %2, %4 : vector<256x32xf32>
    %cst_5 = arith.constant dense<0.000000e+00> : vector<256xf32>
    %6 = vector.multi_reduction <add>, %5, %cst_5 [1] : vector<256x32xf32> to vector<256xf32>
    %7 = vector.shape_cast %6 : vector<256xf32> to vector<256x1xf32>
    %cst_6 = arith.constant 3.200000e+01 : f32
    %8 = vector.broadcast %cst_6 : f32 to vector<256x1xf32>
    %9 = arith.divf %7, %8 : vector<256x1xf32>
    %10 = vector.broadcast %9 : vector<256x1xf32> to vector<256x32xf32>
    %11 = arith.subf %5, %10 : vector<256x32xf32>
    %12 = arith.mulf %11, %11 : vector<256x32xf32>
    %cst_7 = arith.constant dense<0.000000e+00> : vector<256xf32>
    %13 = vector.multi_reduction <add>, %12, %cst_7 [1] : vector<256x32xf32> to vector<256xf32>
    %14 = vector.shape_cast %13 : vector<256xf32> to vector<256x1xf32>
    %cst_8 = arith.constant 3.200000e+01 : f32
    %15 = vector.broadcast %cst_8 : f32 to vector<256x1xf32>
    %16 = arith.divf %14, %15 : vector<256x1xf32>
    %cst_9 = arith.constant 9.99999974E-6 : f32
    %17 = vector.broadcast %cst_9 : f32 to vector<256x1xf32>
    %18 = arith.addf %16, %17 : vector<256x1xf32>
    %19 = math.rsqrt %18 : vector<256x1xf32>
    %20 = vector.broadcast %19 : vector<256x1xf32> to vector<256x32xf32>
    %21 = arith.mulf %11, %20 : vector<256x32xf32>
    %c1 = arith.constant 1 : index
    %c0_10 = arith.constant 0 : index
    %22 = vector.load %arg2[%c1, %c0_10] : memref<3x32xf32, #tpu.memory_space<vmem>>, vector<1x32xf32>
    %23 = vector.broadcast %22 : vector<1x32xf32> to vector<256x32xf32>
    %24 = arith.mulf %21, %23 : vector<256x32xf32>
    %c2 = arith.constant 2 : index
    %c0_11 = arith.constant 0 : index
    %25 = vector.load %arg2[%c2, %c0_11] : memref<3x32xf32, #tpu.memory_space<vmem>>, vector<1x32xf32>
    %26 = vector.broadcast %25 : vector<1x32xf32> to vector<256x32xf32>
    %27 = arith.addf %24, %26 : vector<256x32xf32>
    %28 = vector.shape_cast %27 : vector<256x32xf32> to vector<2x128x32xf32>
    %c0_12 = arith.constant 0 : index
    %c0_13 = arith.constant 0 : index
    %29 = vector.load %arg3[%c0_12, %c0_13] : memref<128x32xf32, #tpu.memory_space<vmem>>, vector<128x32xf32>
    %30 = vector.shape_cast %29 : vector<128x32xf32> to vector<1x128x32xf32>
    %31 = vector.broadcast %30 : vector<1x128x32xf32> to vector<2x128x32xf32>
    %32 = arith.addf %28, %31 : vector<2x128x32xf32>
    %c0_14 = arith.constant 0 : index
    %c0_15 = arith.constant 0 : index
    %c0_16 = arith.constant 0 : index
    %33 = vector.load %arg4[%c0_14, %c0_15, %c0_16] : memref<2x128x32xf32, #tpu.memory_space<vmem>>, vector<2x128x32xf32>
    tpu.vector_store %arg4[%c0_14, %c0_15, %c0_16], %32 {strides = array<i32>} : memref<2x128x32xf32, #tpu.memory_space<vmem>>, vector<2x128x32xf32>,
    return
  }
}

</mosaic_0001>

<llo_original>
// kernel: tpu_custom_call.1
$region0: #{tpu_custom_call.1}
  #allocation0 [shape = 'u32[]', space=smem, size = 0x4, offset = 0x4, fixed_abs, tag = 'smem constant byte address 0x4 - core index']
  #allocation1 [shape = 'u32[144,128]{1,0:T(1,128)}', space=vmem, size = 0x12000, scoped, tag = 'internal scratch']
  %s0 = inlined_call_operand.vmem [shape: f32[256,8], index: 0, kind: input, shape index: {}]
  %s1 = inlined_call_operand.vmem [shape: f32[8,32], index: 1, kind: input, shape index: {}]
  %s2 = inlined_call_operand.vmem [shape: f32[3,32], index: 2, kind: input, shape index: {}]
  %s3 = inlined_call_operand.vmem [shape: f32[128,32], index: 3, kind: input, shape index: {}]
  %s4 = inlined_call_operand.vmem [shape: f32[2,128,32], index: 4, kind: output, shape index: {}]
  %s5 = sld [smem:[#allocation0]]
  $region26: #{tpu_custom_call.1} parent=0
    _
  %s7 = ssub.s32 1, %s5
  %s8 = scalar_select 0, %s7, %s5
  // Predicated region
  $region2: #{tpu_custom_call.1} parent=0 // pred_check
    _
  $region3: #{tpu_custom_call.1} parent=0 // pred_check_branch
    %10 = sbr.rel (0) target = $region5
  $region4: #{tpu_custom_call.1} parent=0 // pred_region
    _
  $region5: #{tpu_custom_call.1} parent=0 // pred_fallthru
    _
  // Predicated region
  $region6: #{tpu_custom_call.1} parent=0 // pred_check
    _
  $region7: #{tpu_custom_call.1} parent=0 // pred_check_branch
    %12 = sbr.rel (0) target = $region9
  $region8: #{tpu_custom_call.1} parent=0 // pred_region
    _
  $region9: #{tpu_custom_call.1} parent=0 // pred_fallthru
    _
  // Predicated region
  $region10: #{tpu_custom_call.1} parent=0 // pred_check
    _
  $region11: #{tpu_custom_call.1} parent=0 // pred_check_branch
    %14 = sbr.rel (0) target = $region13
  $region12: #{tpu_custom_call.1} parent=0 // pred_region
    _
  $region13: #{tpu_custom_call.1} parent=0 // pred_fallthru
    _
  // Predicated region
  $region14: #{tpu_custom_call.1} parent=0 // pred_check
    _
  $region15: #{tpu_custom_call.1} parent=0 // pred_check_branch
    %16 = sbr.rel (0) target = $region17
  $region16: #{tpu_custom_call.1} parent=0 // pred_region
    _
  $region17: #{tpu_custom_call.1} parent=0 // pred_fallthru
    _
  %v17 = vld [vmem:[%s0] sm:$0xff]
  %v18 = vld [vmem:[%s0 + $0x8] sm:$0xff]
  %v19 = vld [vmem:[%s0 + $0x10] sm:$0xff]
  %v20 = vld [vmem:[%s0 + $0x18] sm:$0xff]
  %v21 = vld [vmem:[%s0 + $0x20] sm:$0xff]
  %v22 = vld [vmem:[%s0 + $0x28] sm:$0xff]
  %v23 = vld [vmem:[%s0 + $0x30] sm:$0xff]
  %v24 = vld [vmem:[%s0 + $0x38] sm:$0xff]
  %v25 = vld [vmem:[%s0 + $0x40] sm:$0xff]
  %v26 = vld [vmem:[%s0 + $0x48] sm:$0xff]
  %v27 = vld [vmem:[%s0 + $0x50] sm:$0xff]
  %v28 = vld [vmem:[%s0 + $0x58] sm:$0xff]
  %v29 = vld [vmem:[%s0 + $0x60] sm:$0xff]
  %v30 = vld [vmem:[%s0 + $0x68] sm:$0xff]
  %v31 = vld [vmem:[%s0 + $0x70] sm:$0xff]
  %v32 = vld [vmem:[%s0 + $0x78] sm:$0xff]
  %v33 = vld [vmem:[%s0 + $0x80] sm:$0xff]
  %v34 = vld [vmem:[%s0 + $0x88] sm:$0xff]
  %v35 = vld [vmem:[%s0 + $0x90] sm:$0xff]
  %v36 = vld [vmem:[%s0 + $0x98] sm:$0xff]
  %v37 = vld [vmem:[%s0 + $0xa0] sm:$0xff]
  %v38 = vld [vmem:[%s0 + $0xa8] sm:$0xff]
  %v39 = vld [vmem:[%s0 + $0xb0] sm:$0xff]
  %v40 = vld [vmem:[%s0 + $0xb8] sm:$0xff]
  %v41 = vld [vmem:[%s0 + $0xc0] sm:$0xff]
  %v42 = vld [vmem:[%s0 + $0xc8] sm:$0xff]
  %v43 = vld [vmem:[%s0 + $0xd0] sm:$0xff]
  %v44 = vld [vmem:[%s0 + $0xd8] sm:$0xff]
  %v45 = vld [vmem:[%s0 + $0xe0] sm:$0xff]
  %v46 = vld [vmem:[%s0 + $0xe8] sm:$0xff]
  %v47 = vld [vmem:[%s0 + $0xf0] sm:$0xff]
  %v48 = vld [vmem:[%s0 + $0xf8] sm:$0xff]
  %v49 = vld [vmem:[%s1] sm:$0xff]
  %v50 = vld [vmem:[%s2] sm:$0x1]
  %v51 = vlaneseq
  %v52 = vshrl.u32 %v51, 7
  %v53 = vsub.s32 0, %v52
  %v54 = vrot.slane %v50, %v53
  %vm55 = vcmask 64512
  %v57 = vsel %vm55, %v17, 0
  %v60 = vsel %vm55, %v18, 0
  %v63 = vsel %vm55, %v19, 0
  %v66 = vsel %vm55, %v20, 0
  %v69 = vsel %vm55, %v21, 0
  %v72 = vsel %vm55, %v22, 0
  %v75 = vsel %vm55, %v23, 0
  %v78 = vsel %vm55, %v24, 0
  %v81 = vsel %vm55, %v25, 0
  %v84 = vsel %vm55, %v26, 0
  %v87 = vsel %vm55, %v27, 0
  %v90 = vsel %vm55, %v28, 0
  %v93 = vsel %vm55, %v29, 0
  %v96 = vsel %vm55, %v30, 0
  %v99 = vsel %vm55, %v31, 0
  %v102 = vsel %vm55, %v32, 0
  %v105 = vsel %vm55, %v33, 0
  %v108 = vsel %vm55, %v34, 0
  %v111 = vsel %vm55, %v35, 0
  %v114 = vsel %vm55, %v36, 0
  %v117 = vsel %vm55, %v37, 0
  %v120 = vsel %vm55, %v38, 0
  %v123 = vsel %vm55, %v39, 0
  %v126 = vsel %vm55, %v40, 0
  %v129 = vsel %vm55, %v41, 0
  %v132 = vsel %vm55, %v42, 0
  %v135 = vsel %vm55, %v43, 0
  %v138 = vsel %vm55, %v44, 0
  %v141 = vsel %vm55, %v45, 0
  %v144 = vsel %vm55, %v46, 0
  %v147 = vsel %vm55, %v47, 0
  %v150 = vsel %vm55, %v48, 0
  %152 = vmatprep.subr.mxu0 0.0
  %153 = vmatpush1.msra.mxu0 0.0
  %154 = vmatprep.subr.mxu0 0.0
  %155 = vmatpush1.msra.mxu0 0.0
  %156 = vmatprep.subr.mxu0 0.0
  %157 = vmatpush1.msra.mxu0 0.0
  %158 = vmatprep.subr.mxu0 0.0
  %159 = vmatpush1.msra.mxu0 0.0
  %160 = vmatprep.subr.mxu0 0.0
  %161 = vmatpush1.msra.mxu0 0.0
  %162 = vmatprep.subr.mxu0 0.0
  %163 = vmatpush1.msra.mxu0 0.0
  %164 = vmatprep.subr.mxu0 0.0
  %165 = vmatpush1.msra.mxu0 0.0
  %166 = vmatprep.subr.mxu0 0.0
  %167 = vmatpush1.msra.mxu0 0.0
  %168 = vmatprep.subr.mxu0 0.0
  %169 = vmatpush1.msra.mxu0 0.0
  %170 = vmatprep.subr.mxu0 0.0
  %171 = vmatpush1.msra.mxu0 0.0
  %172 = vmatprep.subr.mxu0 0.0
  %173 = vmatpush1.msra.mxu0 0.0
  %174 = vmatprep.subr.mxu0 0.0
  %175 = vmatpush1.msra.mxu0 0.0
  %176 = vmatprep.subr.mxu0 0.0
  %177 = vmatpush1.msra.mxu0 0.0
  %178 = vmatprep.subr.mxu0 0.0
  %179 = vmatpush1.msra.mxu0 0.0
  %180 = vmatprep.subr.mxu0 0.0
  %181 = vmatpush1.msra.mxu0 0.0
  %182 = vmatprep.subr.mxu0 0.0
  %183 = vmatpush1.msra.mxu0 %v49
  %184 = vmatprep.subr.mxu0 0.0
  %185 = vmatpush2.msra.mxu0 0.0
  %186 = vmatprep.subr.mxu0 0.0
  %187 = vmatpush2.msra.mxu0 0.0
  %188 = vmatprep.subr.mxu0 0.0
  %189 = vmatpush2.msra.mxu0 0.0
  %190 = vmatprep.subr.mxu0 0.0
  %191 = vmatpush2.msra.mxu0 0.0
  %192 = vmatprep.subr.mxu0 0.0
  %193 = vmatpush2.msra.mxu0 0.0
  %194 = vmatprep.subr.mxu0 0.0
  %195 = vmatpush2.msra.mxu0 0.0
  %196 = vmatprep.subr.mxu0 0.0
  %197 = vmatpush2.msra.mxu0 0.0
  %198 = vmatprep.subr.mxu0 0.0
  %199 = vmatpush2.msra.mxu0 0.0
  %200 = vmatprep.subr.mxu0 0.0
  %201 = vmatpush2.msra.mxu0 0.0
  %202 = vmatprep.subr.mxu0 0.0
  %203 = vmatpush2.msra.mxu0 0.0
  %204 = vmatprep.subr.mxu0 0.0
  %205 = vmatpush2.msra.mxu0 0.0
  %206 = vmatprep.subr.mxu0 0.0
  %207 = vmatpush2.msra.mxu0 0.0
  %208 = vmatprep.subr.mxu0 0.0
  %209 = vmatpush2.msra.mxu0 0.0
  %210 = vmatprep.subr.mxu0 0.0
  %211 = vmatpush2.msra.mxu0 0.0
  %212 = vmatprep.subr.mxu0 0.0
  %213 = vmatpush2.msra.mxu0 0.0
  %214 = vmatprep.subr.mxu0 0.0
  %215 = vmatpush2.msra.mxu0 0.0
  %216 = vmatprep.mubr.f32.mxu0 0.0
  %217 = vmatmul.mubr.f32.gmra.mxu0 %v57
  %v218 = vpop.f32.mrf.mxu0
  %v219 = vadd.f32 %v54, %v218
  %v220 = vpop.f32.mrf.mxu0
  %221 = vmatprep.mubr.f32.mxu0 0.0
  %222 = vmatmul.mubr.f32.gmra.mxu0 %v60
  %v223 = vpop.f32.mrf.mxu0
  %v224 = vadd.f32 %v54, %v223
  %v225 = vpop.f32.mrf.mxu0
  %226 = vmatprep.mubr.f32.mxu0 0.0
  %227 = vmatmul.mubr.f32.gmra.mxu0 %v63
  %v228 = vpop.f32.mrf.mxu0
  %v229 = vadd.f32 %v54, %v228
  %v230 = vpop.f32.mrf.mxu0
  %231 = vmatprep.mubr.f32.mxu0 0.0
  %232 = vmatmul.mubr.f32.gmra.mxu0 %v66
  %v233 = vpop.f32.mrf.mxu0
  %v234 = vadd.f32 %v54, %v233
  %v235 = vpop.f32.mrf.mxu0
  %236 = vmatprep.mubr.f32.mxu0 0.0
  %237 = vmatmul.mubr.f32.gmra.mxu0 %v69
  %v238 = vpop.f32.mrf.mxu0
  %v239 = vadd.f32 %v54, %v238
  %v240 = vpop.f32.mrf.mxu0
  %241 = vmatprep.mubr.f32.mxu0 0.0
  %242 = vmatmul.mubr.f32.gmra.mxu0 %v72
  %v243 = vpop.f32.mrf.mxu0
  %v244 = vadd.f32 %v54, %v243
  %v245 = vpop.f32.mrf.mxu0
  %246 = vmatprep.mubr.f32.mxu0 0.0
  %247 = vmatmul.mubr.f32.gmra.mxu0 %v75
  %v248 = vpop.f32.mrf.mxu0
  %v249 = vadd.f32 %v54, %v248
  %v250 = vpop.f32.mrf.mxu0
  %251 = vmatprep.mubr.f32.mxu0 0.0
  %252 = vmatmul.mubr.f32.gmra.mxu0 %v78
  %v253 = vpop.f32.mrf.mxu0
  %v254 = vadd.f32 %v54, %v253
  %v255 = vpop.f32.mrf.mxu0
  %256 = vmatprep.mubr.f32.mxu0 0.0
  %257 = vmatmul.mubr.f32.gmra.mxu0 %v81
  %v258 = vpop.f32.mrf.mxu0
  %v259 = vadd.f32 %v54, %v258
  %v260 = vpop.f32.mrf.mxu0
  %261 = vmatprep.mubr.f32.mxu0 0.0
  %262 = vmatmul.mubr.f32.gmra.mxu0 %v84
  %v263 = vpop.f32.mrf.mxu0
  %v264 = vadd.f32 %v54, %v263
  %v265 = vpop.f32.mrf.mxu0
  %266 = vmatprep.mubr.f32.mxu0 0.0
  %267 = vmatmul.mubr.f32.gmra.mxu0 %v87
  %v268 = vpop.f32.mrf.mxu0
  %v269 = vadd.f32 %v54, %v268
  %v270 = vpop.f32.mrf.mxu0
  %271 = vmatprep.mubr.f32.mxu0 0.0
  %272 = vmatmul.mubr.f32.gmra.mxu0 %v90
  %v273 = vpop.f32.mrf.mxu0
  %v274 = vadd.f32 %v54, %v273
  %v275 = vpop.f32.mrf.mxu0
  %276 = vmatprep.mubr.f32.mxu0 0.0
  %277 = vmatmul.mubr.f32.gmra.mxu0 %v93
  %v278 = vpop.f32.mrf.mxu0
  %v279 = vadd.f32 %v54, %v278
  %v280 = vpop.f32.mrf.mxu0
  %281 = vmatprep.mubr.f32.mxu0 0.0
  %282 = vmatmul.mubr.f32.gmra.mxu0 %v96
  %v283 = vpop.f32.mrf.mxu0
  %v284 = vadd.f32 %v54, %v283
  %v285 = vpop.f32.mrf.mxu0
  %286 = vmatprep.mubr.f32.mxu0 0.0
  %287 = vmatmul.mubr.f32.gmra.mxu0 %v99
  %v288 = vpop.f32.mrf.mxu0
  %v289 = vadd.f32 %v54, %v288
  %v290 = vpop.f32.mrf.mxu0
  %291 = vmatprep.mubr.f32.mxu0 0.0
  %292 = vmatmul.mubr.f32.gmra.mxu0 %v102
  %v293 = vpop.f32.mrf.mxu0
  %v294 = vadd.f32 %v54, %v293
  %v295 = vpop.f32.mrf.mxu0
  %296 = vmatprep.mubr.f32.mxu0 0.0
  %297 = vmatmul.mubr.f32.gmra.mxu0 %v105
  %v298 = vpop.f32.mrf.mxu0
  %v299 = vadd.f32 %v54, %v298
  %v300 = vpop.f32.mrf.mxu0
  %301 = vmatprep.mubr.f32.mxu0 0.0
  %302 = vmatmul.mubr.f32.gmra.mxu0 %v108
  %v303 = vpop.f32.mrf.mxu0
  %v304 = vadd.f32 %v54, %v303
  %v305 = vpop.f32.mrf.mxu0
  %306 = vmatprep.mubr.f32.mxu0 0.0
  %307 = vmatmul.mubr.f32.gmra.mxu0 %v111
  %v308 = vpop.f32.mrf.mxu0
  %v309 = vadd.f32 %v54, %v308
  %v310 = vpop.f32.mrf.mxu0
  %311 = vmatprep.mubr.f32.mxu0 0.0
  %312 = vmatmul.mubr.f32.gmra.mxu0 %v114
  %v313 = vpop.f32.mrf.mxu0
  %v314 = vadd.f32 %v54, %v313
  %v315 = vpop.f32.mrf.mxu0
  %316 = vmatprep.mubr.f32.mxu0 0.0
  %317 = vmatmul.mubr.f32.gmra.mxu0 %v117
  %v318 = vpop.f32.mrf.mxu0
  %v319 = vadd.f32 %v54, %v318
  %v320 = vpop.f32.mrf.mxu0
  %321 = vmatprep.mubr.f32.mxu0 0.0
  %322 = vmatmul.mubr.f32.gmra.mxu0 %v120
  %v323 = vpop.f32.mrf.mxu0
  %v324 = vadd.f32 %v54, %v323
  %v325 = vpop.f32.mrf.mxu0
  %326 = vmatprep.mubr.f32.mxu0 0.0
  %327 = vmatmul.mubr.f32.gmra.mxu0 %v123
  %v328 = vpop.f32.mrf.mxu0
  %v329 = vadd.f32 %v54, %v328
  %v330 = vpop.f32.mrf.mxu0
  %331 = vmatprep.mubr.f32.mxu0 0.0
  %332 = vmatmul.mubr.f32.gmra.mxu0 %v126
  %v333 = vpop.f32.mrf.mxu0
  %v334 = vadd.f32 %v54, %v333
  %v335 = vpop.f32.mrf.mxu0
  %336 = vmatprep.mubr.f32.mxu0 0.0
  %337 = vmatmul.mubr.f32.gmra.mxu0 %v129
  %v338 = vpop.f32.mrf.mxu0
  %v339 = vadd.f32 %v54, %v338
  %v340 = vpop.f32.mrf.mxu0
  %341 = vmatprep.mubr.f32.mxu0 0.0
  %342 = vmatmul.mubr.f32.gmra.mxu0 %v132
  %v343 = vpop.f32.mrf.mxu0
  %v344 = vadd.f32 %v54, %v343
  %v345 = vpop.f32.mrf.mxu0
  %346 = vmatprep.mubr.f32.mxu0 0.0
  %347 = vmatmul.mubr.f32.gmra.mxu0 %v135
  %v348 = vpop.f32.mrf.mxu0
  %v349 = vadd.f32 %v54, %v348
  %v350 = vpop.f32.mrf.mxu0
  %351 = vmatprep.mubr.f32.mxu0 0.0
  %352 = vmatmul.mubr.f32.gmra.mxu0 %v138
  %v353 = vpop.f32.mrf.mxu0
  %v354 = vadd.f32 %v54, %v353
  %v355 = vpop.f32.mrf.mxu0
  %356 = vmatprep.mubr.f32.mxu0 0.0
  %357 = vmatmul.mubr.f32.gmra.mxu0 %v141
  %v358 = vpop.f32.mrf.mxu0
  %v359 = vadd.f32 %v54, %v358
  %v360 = vpop.f32.mrf.mxu0
  %361 = vmatprep.mubr.f32.mxu0 0.0
  %362 = vmatmul.mubr.f32.gmra.mxu0 %v144
  %v363 = vpop.f32.mrf.mxu0
  %v364 = vadd.f32 %v54, %v363
  %v365 = vpop.f32.mrf.mxu0
  %366 = vmatprep.mubr.f32.mxu0 0.0
  %367 = vmatmul.mubr.f32.gmra.mxu0 %v147
  %v368 = vpop.f32.mrf.mxu0
  %v369 = vadd.f32 %v54, %v368
  %v370 = vpop.f32.mrf.mxu0
  %371 = vmatprep.mubr.f32.mxu0 0.0
  %372 = vmatmul.mubr.f32.gmra.mxu0 %v150
  %v373 = vpop.f32.mrf.mxu0
  %v374 = vadd.f32 %v54, %v373
  %v375 = vpop.f32.mrf.mxu0
  %376 = vdwg.mxu0
  %vm377 = vcmask 261120
  %v378 = vsel %vm377, %v219, 0.0
  %379 = vadd.xlane.f32.xlu0 %v378
  %v380 = vpop.xlane.xlu0 %379
  %v381 = vsel %vm377, %v224, 0.0
  %382 = vadd.xlane.f32.xlu0 %v381
  %v383 = vpop.xlane.xlu0 %382
  %v384 = vsel %vm377, %v229, 0.0
  %385 = vadd.xlane.f32.xlu0 %v384
  %v386 = vpop.xlane.xlu0 %385
  %v387 = vsel %vm377, %v234, 0.0
  %388 = vadd.xlane.f32.xlu0 %v387
  %v389 = vpop.xlane.xlu0 %388
  %v390 = vsel %vm377, %v239, 0.0
  %391 = vadd.xlane.f32.xlu0 %v390
  %v392 = vpop.xlane.xlu0 %391
  %v393 = vsel %vm377, %v244, 0.0
  %394 = vadd.xlane.f32.xlu0 %v393
  %v395 = vpop.xlane.xlu0 %394
  %v396 = vsel %vm377, %v249, 0.0
  %397 = vadd.xlane.f32.xlu0 %v396
  %v398 = vpop.xlane.xlu0 %397
  %v399 = vsel %vm377, %v254, 0.0
  %400 = vadd.xlane.f32.xlu0 %v399
  %v401 = vpop.xlane.xlu0 %400
  %v402 = vsel %vm377, %v259, 0.0
  %403 = vadd.xlane.f32.xlu0 %v402
  %v404 = vpop.xlane.xlu0 %403
  %v405 = vsel %vm377, %v264, 0.0
  %406 = vadd.xlane.f32.xlu0 %v405
  %v407 = vpop.xlane.xlu0 %406
  %v408 = vsel %vm377, %v269, 0.0
  %409 = vadd.xlane.f32.xlu0 %v408
  %v410 = vpop.xlane.xlu0 %409
  %v411 = vsel %vm377, %v274, 0.0
  %412 = vadd.xlane.f32.xlu0 %v411
  %v413 = vpop.xlane.xlu0 %412
  %v414 = vsel %vm377, %v279, 0.0
  %415 = vadd.xlane.f32.xlu0 %v414
  %v416 = vpop.xlane.xlu0 %415
  %v417 = vsel %vm377, %v284, 0.0
  %418 = vadd.xlane.f32.xlu0 %v417
  %v419 = vpop.xlane.xlu0 %418
  %v420 = vsel %vm377, %v289, 0.0
  %421 = vadd.xlane.f32.xlu0 %v420
  %v422 = vpop.xlane.xlu0 %421
  %v423 = vsel %vm377, %v294, 0.0
  %424 = vadd.xlane.f32.xlu0 %v423
  %v425 = vpop.xlane.xlu0 %424
  %v426 = vsel %vm377, %v299, 0.0
  %427 = vadd.xlane.f32.xlu0 %v426
  %v428 = vpop.xlane.xlu0 %427
  %v429 = vsel %vm377, %v304, 0.0
  %430 = vadd.xlane.f32.xlu0 %v429
  %v431 = vpop.xlane.xlu0 %430
  %v432 = vsel %vm377, %v309, 0.0
  %433 = vadd.xlane.f32.xlu0 %v432
  %v434 = vpop.xlane.xlu0 %433
  %v435 = vsel %vm377, %v314, 0.0
  %436 = vadd.xlane.f32.xlu0 %v435
  %v437 = vpop.xlane.xlu0 %436
  %v438 = vsel %vm377, %v319, 0.0
  %439 = vadd.xlane.f32.xlu0 %v438
  %v440 = vpop.xlane.xlu0 %439
  %v441 = vsel %vm377, %v324, 0.0
  %442 = vadd.xlane.f32.xlu0 %v441
  %v443 = vpop.xlane.xlu0 %442
  %v444 = vsel %vm377, %v329, 0.0
  %445 = vadd.xlane.f32.xlu0 %v444
  %v446 = vpop.xlane.xlu0 %445
  %v447 = vsel %vm377, %v334, 0.0
  %448 = vadd.xlane.f32.xlu0 %v447
  %v449 = vpop.xlane.xlu0 %448
  %v450 = vsel %vm377, %v339, 0.0
  %451 = vadd.xlane.f32.xlu0 %v450
  %v452 = vpop.xlane.xlu0 %451
  %v453 = vsel %vm377, %v344, 0.0
  %454 = vadd.xlane.f32.xlu0 %v453
  %v455 = vpop.xlane.xlu0 %454
  %v456 = vsel %vm377, %v349, 0.0
  %457 = vadd.xlane.f32.xlu0 %v456
  %v458 = vpop.xlane.xlu0 %457
  %v459 = vsel %vm377, %v354, 0.0
  %460 = vadd.xlane.f32.xlu0 %v459
  %v461 = vpop.xlane.xlu0 %460
  %v462 = vsel %vm377, %v359, 0.0
  %463 = vadd.xlane.f32.xlu0 %v462
  %v464 = vpop.xlane.xlu0 %463
  %v465 = vsel %vm377, %v364, 0.0
  %466 = vadd.xlane.f32.xlu0 %v465
  %v467 = vpop.xlane.xlu0 %466
  %v468 = vsel %vm377, %v369, 0.0
  %469 = vadd.xlane.f32.xlu0 %v468
  %v470 = vpop.xlane.xlu0 %469
  %v471 = vsel %vm377, %v374, 0.0
  %472 = vadd.xlane.f32.xlu0 %v471
  %v473 = vpop.xlane.xlu0 %472
  %v474 = vrcp.pop 32.0
  %v475 = vmul.f32 %v380, %v474
  %v476 = vmul.f32 %v383, %v474
  %v477 = vmul.f32 %v386, %v474
  %v478 = vmul.f32 %v389, %v474
  %v479 = vmul.f32 %v392, %v474
  %v480 = vmul.f32 %v395, %v474
  %v481 = vmul.f32 %v398, %v474
  %v482 = vmul.f32 %v401, %v474
  %v483 = vmul.f32 %v404, %v474
  %v484 = vmul.f32 %v407, %v474
  %v485 = vmul.f32 %v410, %v474
  %v486 = vmul.f32 %v413, %v474
  %v487 = vmul.f32 %v416, %v474
  %v488 = vmul.f32 %v419, %v474
  %v489 = vmul.f32 %v422, %v474
  %v490 = vmul.f32 %v425, %v474
  %v491 = vmul.f32 %v428, %v474
  %v492 = vmul.f32 %v431, %v474
  %v493 = vmul.f32 %v434, %v474
  %v494 = vmul.f32 %v437, %v474
  %v495 = vmul.f32 %v440, %v474
  %v496 = vmul.f32 %v443, %v474
  %v497 = vmul.f32 %v446, %v474
  %v498 = vmul.f32 %v449, %v474
  %v499 = vmul.f32 %v452, %v474
  %v500 = vmul.f32 %v455, %v474
  %v501 = vmul.f32 %v458, %v474
  %v502 = vmul.f32 %v461, %v474
  %v503 = vmul.f32 %v464, %v474
  %v504 = vmul.f32 %v467, %v474
  %v505 = vmul.f32 %v470, %v474
  %v506 = vmul.f32 %v473, %v474
  %v507 = vsub.f32 %v219, %v475
  %v508 = vsub.f32 %v224, %v476
  %v509 = vsub.f32 %v229, %v477
  %v510 = vsub.f32 %v234, %v478
  %v511 = vsub.f32 %v239, %v479
  %v512 = vsub.f32 %v244, %v480
  %v513 = vsub.f32 %v249, %v481
  %v514 = vsub.f32 %v254, %v482
  %v515 = vsub.f32 %v259, %v483
  %v516 = vsub.f32 %v264, %v484
  %v517 = vsub.f32 %v269, %v485
  %v518 = vsub.f32 %v274, %v486
  %v519 = vsub.f32 %v279, %v487
  %v520 = vsub.f32 %v284, %v488
  %v521 = vsub.f32 %v289, %v489
  %v522 = vsub.f32 %v294, %v490
  %v523 = vsub.f32 %v299, %v491
  %v524 = vsub.f32 %v304, %v492
  %v525 = vsub.f32 %v309, %v493
  %v526 = vsub.f32 %v314, %v494
  %v527 = vsub.f32 %v319, %v495
  %v528 = vsub.f32 %v324, %v496
  %v529 = vsub.f32 %v329, %v497
  %v530 = vsub.f32 %v334, %v498
  %v531 = vsub.f32 %v339, %v499
  %v532 = vsub.f32 %v344, %v500
  %v533 = vsub.f32 %v349, %v501
  %v534 = vsub.f32 %v354, %v502
  %v535 = vsub.f32 %v359, %v503
  %v536 = vsub.f32 %v364, %v504
  %v537 = vsub.f32 %v369, %v505
  %v538 = vsub.f32 %v374, %v506
  %v539 = vmul.f32 %v507, %v507
  %v540 = vmul.f32 %v508, %v508
  %v541 = vmul.f32 %v509, %v509
  %v542 = vmul.f32 %v510, %v510
  %v543 = vmul.f32 %v511, %v511
  %v544 = vmul.f32 %v512, %v512
  %v545 = vmul.f32 %v513, %v513
  %v546 = vmul.f32 %v514, %v514
  %v547 = vmul.f32 %v515, %v515
  %v548 = vmul.f32 %v516, %v516
  %v549 = vmul.f32 %v517, %v517
  %v550 = vmul.f32 %v518, %v518
  %v551 = vmul.f32 %v519, %v519
  %v552 = vmul.f32 %v520, %v520
  %v553 = vmul.f32 %v521, %v521
  %v554 = vmul.f32 %v522, %v522
  %v555 = vmul.f32 %v523, %v523
  %v556 = vmul.f32 %v524, %v524
  %v557 = vmul.f32 %v525, %v525
  %v558 = vmul.f32 %v526, %v526
  %v559 = vmul.f32 %v527, %v527
  %v560 = vmul.f32 %v528, %v528
  %v561 = vmul.f32 %v529, %v529
  %v562 = vmul.f32 %v530, %v530
  %v563 = vmul.f32 %v531, %v531
  %v564 = vmul.f32 %v532, %v532
  %v565 = vmul.f32 %v533, %v533
  %v566 = vmul.f32 %v534, %v534
  %v567 = vmul.f32 %v535, %v535
  %v568 = vmul.f32 %v536, %v536
  %v569 = vmul.f32 %v537, %v537
  %v570 = vmul.f32 %v538, %v538
  %v571 = vsel %vm377, %v539, 0.0
  %572 = vadd.xlane.f32.xlu0 %v571
  %v573 = vpop.xlane.xlu0 %572
  %v574 = vsel %vm377, %v540, 0.0
  %575 = vadd.xlane.f32.xlu0 %v574
  %v576 = vpop.xlane.xlu0 %575
  %v577 = vsel %vm377, %v541, 0.0
  %578 = vadd.xlane.f32.xlu0 %v577
  %v579 = vpop.xlane.xlu0 %578
  %v580 = vsel %vm377, %v542, 0.0
  %581 = vadd.xlane.f32.xlu0 %v580
  %v582 = vpop.xlane.xlu0 %581
  %v583 = vsel %vm377, %v543, 0.0
  %584 = vadd.xlane.f32.xlu0 %v583
  %v585 = vpop.xlane.xlu0 %584
  %v586 = vsel %vm377, %v544, 0.0
  %587 = vadd.xlane.f32.xlu0 %v586
  %v588 = vpop.xlane.xlu0 %587
  %v589 = vsel %vm377, %v545, 0.0
  %590 = vadd.xlane.f32.xlu0 %v589
  %v591 = vpop.xlane.xlu0 %590
  %v592 = vsel %vm377, %v546, 0.0
  %593 = vadd.xlane.f32.xlu0 %v592
  %v594 = vpop.xlane.xlu0 %593
  %v595 = vsel %vm377, %v547, 0.0
  %596 = vadd.xlane.f32.xlu0 %v595
  %v597 = vpop.xlane.xlu0 %596
  %v598 = vsel %vm377, %v548, 0.0
  %599 = vadd.xlane.f32.xlu0 %v598
  %v600 = vpop.xlane.xlu0 %599
  %v601 = vsel %vm377, %v549, 0.0
  %602 = vadd.xlane.f32.xlu0 %v601
  %v603 = vpop.xlane.xlu0 %602
  %v604 = vsel %vm377, %v550, 0.0
  %605 = vadd.xlane.f32.xlu0 %v604
  %v606 = vpop.xlane.xlu0 %605
  %v607 = vsel %vm377, %v551, 0.0
  %608 = vadd.xlane.f32.xlu0 %v607
  %v609 = vpop.xlane.xlu0 %608
  %v610 = vsel %vm377, %v552, 0.0
  %611 = vadd.xlane.f32.xlu0 %v610
  %v612 = vpop.xlane.xlu0 %611
  %v613 = vsel %vm377, %v553, 0.0
  %614 = vadd.xlane.f32.xlu0 %v613
  %v615 = vpop.xlane.xlu0 %614
  %v616 = vsel %vm377, %v554, 0.0
  %617 = vadd.xlane.f32.xlu0 %v616
  %v618 = vpop.xlane.xlu0 %617
  %v619 = vsel %vm377, %v555, 0.0
  %620 = vadd.xlane.f32.xlu0 %v619
  %v621 = vpop.xlane.xlu0 %620
  %v622 = vsel %vm377, %v556, 0.0
  %623 = vadd.xlane.f32.xlu0 %v622
  %v624 = vpop.xlane.xlu0 %623
  %v625 = vsel %vm377, %v557, 0.0
  %626 = vadd.xlane.f32.xlu0 %v625
  %v627 = vpop.xlane.xlu0 %626
  %v628 = vsel %vm377, %v558, 0.0
  %629 = vadd.xlane.f32.xlu0 %v628
  %v630 = vpop.xlane.xlu0 %629
  %v631 = vsel %vm377, %v559, 0.0
  %632 = vadd.xlane.f32.xlu0 %v631
  %v633 = vpop.xlane.xlu0 %632
  %v634 = vsel %vm377, %v560, 0.0
  %635 = vadd.xlane.f32.xlu0 %v634
  %v636 = vpop.xlane.xlu0 %635
  %v637 = vsel %vm377, %v561, 0.0
  %638 = vadd.xlane.f32.xlu0 %v637
  %v639 = vpop.xlane.xlu0 %638
  %v640 = vsel %vm377, %v562, 0.0
  %641 = vadd.xlane.f32.xlu0 %v640
  %v642 = vpop.xlane.xlu0 %641
  %v643 = vsel %vm377, %v563, 0.0
  %644 = vadd.xlane.f32.xlu0 %v643
  %v645 = vpop.xlane.xlu0 %644
  %v646 = vsel %vm377, %v564, 0.0
  %647 = vadd.xlane.f32.xlu0 %v646
  %v648 = vpop.xlane.xlu0 %647
  %v649 = vsel %vm377, %v565, 0.0
  %650 = vadd.xlane.f32.xlu0 %v649
  %v651 = vpop.xlane.xlu0 %650
  %v652 = vsel %vm377, %v566, 0.0
  %653 = vadd.xlane.f32.xlu0 %v652
  %v654 = vpop.xlane.xlu0 %653
  %v655 = vsel %vm377, %v567, 0.0
  %656 = vadd.xlane.f32.xlu0 %v655
  %v657 = vpop.xlane.xlu0 %656
  %v658 = vsel %vm377, %v568, 0.0
  %659 = vadd.xlane.f32.xlu0 %v658
  %v660 = vpop.xlane.xlu0 %659
  %v661 = vsel %vm377, %v569, 0.0
  %662 = vadd.xlane.f32.xlu0 %v661
  %v663 = vpop.xlane.xlu0 %662
  %v664 = vsel %vm377, %v570, 0.0
  %665 = vadd.xlane.f32.xlu0 %v664
  %v666 = vpop.xlane.xlu0 %665
  %v667 = vmul.f32 %v573, %v474
  %v668 = vmul.f32 %v576, %v474
  %v669 = vmul.f32 %v579, %v474
  %v670 = vmul.f32 %v582, %v474
  %v671 = vmul.f32 %v585, %v474
  %v672 = vmul.f32 %v588, %v474
  %v673 = vmul.f32 %v591, %v474
  %v674 = vmul.f32 %v594, %v474
  %v675 = vmul.f32 %v597, %v474
  %v676 = vmul.f32 %v600, %v474
  %v677 = vmul.f32 %v603, %v474
  %v678 = vmul.f32 %v606, %v474
  %v679 = vmul.f32 %v609, %v474
  %v680 = vmul.f32 %v612, %v474
  %v681 = vmul.f32 %v615, %v474
  %v682 = vmul.f32 %v618, %v474
  %v683 = vmul.f32 %v621, %v474
  %v684 = vmul.f32 %v624, %v474
  %v685 = vmul.f32 %v627, %v474
  %v686 = vmul.f32 %v630, %v474
  %v687 = vmul.f32 %v633, %v474
  %v688 = vmul.f32 %v636, %v474
  %v689 = vmul.f32 %v639, %v474
  %v690 = vmul.f32 %v642, %v474
  %v691 = vmul.f32 %v645, %v474
  %v692 = vmul.f32 %v648, %v474
  %v693 = vmul.f32 %v651, %v474
  %v694 = vmul.f32 %v654, %v474
  %v695 = vmul.f32 %v657, %v474
  %v696 = vmul.f32 %v660, %v474
  %v697 = vmul.f32 %v663, %v474
  %v698 = vmul.f32 %v666, %v474
  %v699 = vadd.f32 %v667, 1e-05
  %v700 = vadd.f32 %v668, 1e-05
  %v701 = vadd.f32 %v669, 1e-05
  %v702 = vadd.f32 %v670, 1e-05
  %v703 = vadd.f32 %v671, 1e-05
  %v704 = vadd.f32 %v672, 1e-05
  %v705 = vadd.f32 %v673, 1e-05
  %v706 = vadd.f32 %v674, 1e-05
  %v707 = vadd.f32 %v675, 1e-05
  %v708 = vadd.f32 %v676, 1e-05
  %v709 = vadd.f32 %v677, 1e-05
  %v710 = vadd.f32 %v678, 1e-05
  %v711 = vadd.f32 %v679, 1e-05
  %v712 = vadd.f32 %v680, 1e-05
  %v713 = vadd.f32 %v681, 1e-05
  %v714 = vadd.f32 %v682, 1e-05
  %v715 = vadd.f32 %v683, 1e-05
  %v716 = vadd.f32 %v684, 1e-05
  %v717 = vadd.f32 %v685, 1e-05
  %v718 = vadd.f32 %v686, 1e-05
  %v719 = vadd.f32 %v687, 1e-05
  %v720 = vadd.f32 %v688, 1e-05
  %v721 = vadd.f32 %v689, 1e-05
  %v722 = vadd.f32 %v690, 1e-05
  %v723 = vadd.f32 %v691, 1e-05
  %v724 = vadd.f32 %v692, 1e-05
  %v725 = vadd.f32 %v693, 1e-05
  %v726 = vadd.f32 %v694, 1e-05
  %v727 = vadd.f32 %v695, 1e-05
  %v728 = vadd.f32 %v696, 1e-05
  %v729 = vadd.f32 %v697, 1e-05
  %v730 = vadd.f32 %v698, 1e-05
  %v731 = vrsqrt.pop %v699
  %v732 = vrsqrt.pop %v700
  %v733 = vrsqrt.pop %v701
  %v734 = vrsqrt.pop %v702
  %v735 = vrsqrt.pop %v703
  %v736 = vrsqrt.pop %v704
  %v737 = vrsqrt.pop %v705
  %v738 = vrsqrt.pop %v706
  %v739 = vrsqrt.pop %v707
  %v740 = vrsqrt.pop %v708
  %v741 = vrsqrt.pop %v709
  %v742 = vrsqrt.pop %v710
  %v743 = vrsqrt.pop %v711
  %v744 = vrsqrt.pop %v712
  %v745 = vrsqrt.pop %v713
  %v746 = vrsqrt.pop %v714
  %v747 = vrsqrt.pop %v715
  %v748 = vrsqrt.pop %v716
  %v749 = vrsqrt.pop %v717
  %v750 = vrsqrt.pop %v718
  %v751 = vrsqrt.pop %v719
  %v752 = vrsqrt.pop %v720
  %v753 = vrsqrt.pop %v721
  %v754 = vrsqrt.pop %v722
  %v755 = vrsqrt.pop %v723
  %v756 = vrsqrt.pop %v724
  %v757 = vrsqrt.pop %v725
  %v758 = vrsqrt.pop %v726
  %v759 = vrsqrt.pop %v727
  %v760 = vrsqrt.pop %v728
  %v761 = vrsqrt.pop %v729
  %v762 = vrsqrt.pop %v730
  %v763 = vmul.f32 %v507, %v731
  %v764 = vmul.f32 %v508, %v732
  %v765 = vmul.f32 %v509, %v733
  %v766 = vmul.f32 %v510, %v734
  %v767 = vmul.f32 %v511, %v735
  %v768 = vmul.f32 %v512, %v736
  %v769 = vmul.f32 %v513, %v737
  %v770 = vmul.f32 %v514, %v738
  %v771 = vmul.f32 %v515, %v739
  %v772 = vmul.f32 %v516, %v740
  %v773 = vmul.f32 %v517, %v741
  %v774 = vmul.f32 %v518, %v742
  %v775 = vmul.f32 %v519, %v743
  %v776 = vmul.f32 %v520, %v744
  %v777 = vmul.f32 %v521, %v745
  %v778 = vmul.f32 %v522, %v746
  %v779 = vmul.f32 %v523, %v747
  %v780 = vmul.f32 %v524, %v748
  %v781 = vmul.f32 %v525, %v749
  %v782 = vmul.f32 %v526, %v750
  %v783 = vmul.f32 %v527, %v751
  %v784 = vmul.f32 %v528, %v752
  %v785 = vmul.f32 %v529, %v753
  %v786 = vmul.f32 %v530, %v754
  %v787 = vmul.f32 %v531, %v755
  %v788 = vmul.f32 %v532, %v756
  %v789 = vmul.f32 %v533, %v757
  %v790 = vmul.f32 %v534, %v758
  %v791 = vmul.f32 %v535, %v759
  %v792 = vmul.f32 %v536, %v760
  %v793 = vmul.f32 %v537, %v761
  %v794 = vmul.f32 %v538, %v762
  %v795 = vld [vmem:[%s2 + $0x1] sm:$0x1]
  %v796 = vlaneseq
  %v797 = vshrl.u32 %v796, 7
  %v798 = vsub.s32 0, %v797
  %v799 = vrot.slane %v795, %v798
  %v800 = vmul.f32 %v763, %v799
  %v801 = vmul.f32 %v764, %v799
  %v802 = vmul.f32 %v765, %v799
  %v803 = vmul.f32 %v766, %v799
  %v804 = vmul.f32 %v767, %v799
  %v805 = vmul.f32 %v768, %v799
  %v806 = vmul.f32 %v769, %v799
  %v807 = vmul.f32 %v770, %v799
  %v808 = vmul.f32 %v771, %v799
  %v809 = vmul.f32 %v772, %v799
  %v810 = vmul.f32 %v773, %v799
  %v811 = vmul.f32 %v774, %v799
  %v812 = vmul.f32 %v775, %v799
  %v813 = vmul.f32 %v776, %v799
  %v814 = vmul.f32 %v777, %v799
  %v815 = vmul.f32 %v778, %v799
  %v816 = vmul.f32 %v779, %v799
  %v817 = vmul.f32 %v780, %v799
  %v818 = vmul.f32 %v781, %v799
  %v819 = vmul.f32 %v782, %v799
  %v820 = vmul.f32 %v783, %v799
  %v821 = vmul.f32 %v784, %v799
  %v822 = vmul.f32 %v785, %v799
  %v823 = vmul.f32 %v786, %v799
  %v824 = vmul.f32 %v787, %v799
  %v825 = vmul.f32 %v788, %v799
  %v826 = vmul.f32 %v789, %v799
  %v827 = vmul.f32 %v790, %v799
  %v828 = vmul.f32 %v791, %v799
  %v829 = vmul.f32 %v792, %v799
  %v830 = vmul.f32 %v793, %v799
  %v831 = vmul.f32 %v794, %v799
  %v832 = vld [vmem:[%s2 + $0x2] sm:$0x1]
  %v833 = vlaneseq
  %v834 = vshrl.u32 %v833, 7
  %v835 = vsub.s32 0, %v834
  %v836 = vrot.slane %v832, %v835
  %v837 = vadd.f32 %v800, %v836
  %v838 = vadd.f32 %v801, %v836
  %v839 = vadd.f32 %v802, %v836
  %v840 = vadd.f32 %v803, %v836
  %v841 = vadd.f32 %v804, %v836
  %v842 = vadd.f32 %v805, %v836
  %v843 = vadd.f32 %v806, %v836
  %v844 = vadd.f32 %v807, %v836
  %v845 = vadd.f32 %v808, %v836
  %v846 = vadd.f32 %v809, %v836
  %v847 = vadd.f32 %v810, %v836
  %v848 = vadd.f32 %v811, %v836
  %v849 = vadd.f32 %v812, %v836
  %v850 = vadd.f32 %v813, %v836
  %v851 = vadd.f32 %v814, %v836
  %v852 = vadd.f32 %v815, %v836
  %v853 = vadd.f32 %v816, %v836
  %v854 = vadd.f32 %v817, %v836
  %v855 = vadd.f32 %v818, %v836
  %v856 = vadd.f32 %v819, %v836
  %v857 = vadd.f32 %v820, %v836
  %v858 = vadd.f32 %v821, %v836
  %v859 = vadd.f32 %v822, %v836
  %v860 = vadd.f32 %v823, %v836
  %v861 = vadd.f32 %v824, %v836
  %v862 = vadd.f32 %v825, %v836
  %v863 = vadd.f32 %v826, %v836
  %v864 = vadd.f32 %v827, %v836
  %v865 = vadd.f32 %v828, %v836
  %v866 = vadd.f32 %v829, %v836
  %v867 = vadd.f32 %v830, %v836
  %v868 = vadd.f32 %v831, %v836
  %v869 = vld [vmem:[%s3] sm:$0xff]
  %v870 = vld [vmem:[%s3 + $0x8] sm:$0xff]
  %v871 = vld [vmem:[%s3 + $0x10] sm:$0xff]
  %v872 = vld [vmem:[%s3 + $0x18] sm:$0xff]
  %v873 = vld [vmem:[%s3 + $0x20] sm:$0xff]
  %v874 = vld [vmem:[%s3 + $0x28] sm:$0xff]
  %v875 = vld [vmem:[%s3 + $0x30] sm:$0xff]
  %v876 = vld [vmem:[%s3 + $0x38] sm:$0xff]
  %v877 = vld [vmem:[%s3 + $0x40] sm:$0xff]
  %v878 = vld [vmem:[%s3 + $0x48] sm:$0xff]
  %v879 = vld [vmem:[%s3 + $0x50] sm:$0xff]
  %v880 = vld [vmem:[%s3 + $0x58] sm:$0xff]
  %v881 = vld [vmem:[%s3 + $0x60] sm:$0xff]
  %v882 = vld [vmem:[%s3 + $0x68] sm:$0xff]
  %v883 = vld [vmem:[%s3 + $0x70] sm:$0xff]
  %v884 = vld [vmem:[%s3 + $0x78] sm:$0xff]
  %v885 = vadd.f32 %v837, %v869
  %v886 = vadd.f32 %v838, %v870
  %v887 = vadd.f32 %v839, %v871
  %v888 = vadd.f32 %v840, %v872
  %v889 = vadd.f32 %v841, %v873
  %v890 = vadd.f32 %v842, %v874
  %v891 = vadd.f32 %v843, %v875
  %v892 = vadd.f32 %v844, %v876
  %v893 = vadd.f32 %v845, %v877
  %v894 = vadd.f32 %v846, %v878
  %v895 = vadd.f32 %v847, %v879
  %v896 = vadd.f32 %v848, %v880
  %v897 = vadd.f32 %v849, %v881
  %v898 = vadd.f32 %v850, %v882
  %v899 = vadd.f32 %v851, %v883
  %v900 = vadd.f32 %v852, %v884
  %v901 = vadd.f32 %v853, %v869
  %v902 = vadd.f32 %v854, %v870
  %v903 = vadd.f32 %v855, %v871
  %v904 = vadd.f32 %v856, %v872
  %v905 = vadd.f32 %v857, %v873
  %v906 = vadd.f32 %v858, %v874
  %v907 = vadd.f32 %v859, %v875
  %v908 = vadd.f32 %v860, %v876
  %v909 = vadd.f32 %v861, %v877
  %v910 = vadd.f32 %v862, %v878
  %v911 = vadd.f32 %v863, %v879
  %v912 = vadd.f32 %v864, %v880
  %v913 = vadd.f32 %v865, %v881
  %v914 = vadd.f32 %v866, %v882
  %v915 = vadd.f32 %v867, %v883
  %v916 = vadd.f32 %v868, %v884
  %917 = vst.msk [vmem:[%s4] sm:$0xff] %vm377, %v885
  %918 = vst.msk [vmem:[%s4 + $0x8] sm:$0xff] %vm377, %v886
  %919 = vst.msk [vmem:[%s4 + $0x10] sm:$0xff] %vm377, %v887
  %920 = vst.msk [vmem:[%s4 + $0x18] sm:$0xff] %vm377, %v888
  %921 = vst.msk [vmem:[%s4 + $0x20] sm:$0xff] %vm377, %v889
  %922 = vst.msk [vmem:[%s4 + $0x28] sm:$0xff] %vm377, %v890
  %923 = vst.msk [vmem:[%s4 + $0x30] sm:$0xff] %vm377, %v891
  %924 = vst.msk [vmem:[%s4 + $0x38] sm:$0xff] %vm377, %v892
  %925 = vst.msk [vmem:[%s4 + $0x40] sm:$0xff] %vm377, %v893
  %926 = vst.msk [vmem:[%s4 + $0x48] sm:$0xff] %vm377, %v894
  %927 = vst.msk [vmem:[%s4 + $0x50] sm:$0xff] %vm377, %v895
  %928 = vst.msk [vmem:[%s4 + $0x58] sm:$0xff] %vm377, %v896
  %929 = vst.msk [vmem:[%s4 + $0x60] sm:$0xff] %vm377, %v897
  %930 = vst.msk [vmem:[%s4 + $0x68] sm:$0xff] %vm377, %v898
  %931 = vst.msk [vmem:[%s4 + $0x70] sm:$0xff] %vm377, %v899
  %932 = vst.msk [vmem:[%s4 + $0x78] sm:$0xff] %vm377, %v900
  %933 = vst.msk [vmem:[%s4 + $0x80] sm:$0xff] %vm377, %v901
  %934 = vst.msk [vmem:[%s4 + $0x88] sm:$0xff] %vm377, %v902
  %935 = vst.msk [vmem:[%s4 + $0x90] sm:$0xff] %vm377, %v903
  %936 = vst.msk [vmem:[%s4 + $0x98] sm:$0xff] %vm377, %v904
  %937 = vst.msk [vmem:[%s4 + $0xa0] sm:$0xff] %vm377, %v905
  %938 = vst.msk [vmem:[%s4 + $0xa8] sm:$0xff] %vm377, %v906
  %939 = vst.msk [vmem:[%s4 + $0xb0] sm:$0xff] %vm377, %v907
  %940 = vst.msk [vmem:[%s4 + $0xb8] sm:$0xff] %vm377, %v908
  %941 = vst.msk [vmem:[%s4 + $0xc0] sm:$0xff] %vm377, %v909
  %942 = vst.msk [vmem:[%s4 + $0xc8] sm:$0xff] %vm377, %v910
  %943 = vst.msk [vmem:[%s4 + $0xd0] sm:$0xff] %vm377, %v911
  %944 = vst.msk [vmem:[%s4 + $0xd8] sm:$0xff] %vm377, %v912
  %945 = vst.msk [vmem:[%s4 + $0xe0] sm:$0xff] %vm377, %v913
  %946 = vst.msk [vmem:[%s4 + $0xe8] sm:$0xff] %vm377, %v914
  %947 = vst.msk [vmem:[%s4 + $0xf0] sm:$0xff] %vm377, %v915
  %948 = vst.msk [vmem:[%s4 + $0xf8] sm:$0xff] %vm377, %v916
  // Predicated region
  $region18: #{tpu_custom_call.1} parent=0 // pred_check
    _
  $region19: #{tpu_custom_call.1} parent=0 // pred_check_branch
    %950 = sbr.rel (0) target = $region21
  $region20: #{tpu_custom_call.1} parent=0 // pred_region
    _
  $region21: #{tpu_custom_call.1} parent=0 // pred_fallthru
    _
  // Predicated region
  $region22: #{tpu_custom_call.1} parent=0 // pred_check
    _
  $region23: #{tpu_custom_call.1} parent=0 // pred_check_branch
    %952 = sbr.rel (0) target = $region25
  $region24: #{tpu_custom_call.1} parent=0 // pred_region
    _
  $region25: #{tpu_custom_call.1} parent=0 // pred_fallthru
    _

</llo_original>
